<compile_context>
chip_gen: v7x
topology: tpu7x:2x2x1
jax: 0.10.0
libtpu: 0.0.40
codegen_flags: <defaults>
</compile_context>

<pallas_src>
import functools

import jax
import jax.numpy as jnp
from jax.experimental import pallas as pl
from jax.experimental.pallas import tpu as pltpu

_BN_EPS = 1e-5


def _vmem_capacity_bytes():
    try:
        return int(pltpu.get_tpu_info().vmem_capacity_bytes)
    except Exception:
        return 64 << 20  # conservative (v7x per-core physical VMEM)


def _round_up(x, m):
    return (x + m - 1) // m * m


def _sublane_fold(c, hw):
    """Power-of-two fold factor r (dividing hw) so c*r fills >= 8 f32 sublanes."""
    r = 1
    while c * r < 8 and hw % (2 * r) == 0:
        r *= 2
    return r


def _pick_hw_tile(hw, rows, max_block_bytes):
    """Largest 128-multiple lane tile with padded (rows, tile) f32 <= max_block_bytes."""
    rows_p = _round_up(rows, 8)
    target = max(128, (max_block_bytes // (4 * rows_p)) // 128 * 128)
    return hw if hw <= target else target


# ---------------------------------------------------------------------------
# Fused single-pass kernel: x resident in VMEM (small/medium feature maps).
# ---------------------------------------------------------------------------
def _fused_kernel(x_ref, gamma_ref, beta_ref, o_ref, *, count):
    x = x_ref[...].astype(jnp.float32)                                 # (N, C, HW)
    s = jnp.sum(jnp.sum(x, axis=0), axis=-1, keepdims=True)            # (C, 1)
    sq = jnp.sum(jnp.sum(x * x, axis=0), axis=-1, keepdims=True)       # (C, 1)
    mean = s / count
    var = jnp.maximum(sq / count - mean * mean, 0.0)
    inv_std = jax.lax.rsqrt(var + _BN_EPS)
    g = gamma_ref[...]                                                  # (C, 1)
    b = beta_ref[...]
    w = jnp.abs(g) / jnp.sum(jnp.abs(g), keepdims=True)                 # NAM weights
    scale = (w * g * inv_std)[None]                                     # (1, C, 1)
    bias = (w * (b - mean * g * inv_std))[None]                         # (1, C, 1)
    o_ref[...] = (jax.nn.sigmoid(x * scale + bias) * x).astype(o_ref.dtype)


# ---------------------------------------------------------------------------
# Pass 1: per-(n, row) sum / sum-of-squares over lane tiles (tail masked).
# ---------------------------------------------------------------------------
def _stats_kernel(x_ref, sum_ref, sq_ref, *, hw_total, hw_tile, mask_tail):
    # x_ref: (Cr, hw_tile) tile;  sum_ref/sq_ref: (Cr, 1) per-n partials (resident over tiles)
    @pl.when(pl.program_id(1) == 0)
    def _():
        sum_ref[...] = jnp.zeros_like(sum_ref)
        sq_ref[...] = jnp.zeros_like(sq_ref)

    x = x_ref[...].astype(jnp.float32)
    if mask_tail:
        lane = jax.lax.broadcasted_iota(jnp.int32, x.shape, 1)
        valid = (pl.program_id(1) * hw_tile + lane) < hw_total
        x = jnp.where(valid, x, 0.0)
    sum_ref[...] += jnp.sum(x, axis=1, keepdims=True)
    sq_ref[...] += jnp.sum(x * x, axis=1, keepdims=True)


# ---------------------------------------------------------------------------
# Pass 2: out = sigmoid(x * scale_row + bias_row) * x, fully parallel.
# ---------------------------------------------------------------------------
def _apply_kernel(x_ref, scale_ref, bias_ref, o_ref):
    x = x_ref[...].astype(jnp.float32)
    z = x * scale_ref[...] + bias_ref[...]
    o_ref[...] = (jax.nn.sigmoid(z) * x).astype(o_ref.dtype)


def channel_att(x, gamma, beta, *, max_block_bytes=4 << 20, single_pass_max_bytes=None):
    """x: (N, C, H, W) NCHW (matching the PyTorch module). gamma/beta: (C,)."""
    N, C, H, W = x.shape
    HW = H * W
    cap = _vmem_capacity_bytes()

    # ---- fused single-pass path: stream x from HBM once when it fits in VMEM ----
    if single_pass_max_bytes is None:
        single_pass_max_bytes = cap // 16
    padded_bytes = N * _round_up(C, 8) * _round_up(HW, 128) * 4
    if padded_bytes <= single_pass_max_bytes:
        x3 = x.reshape(N, C, HW)
        g2 = gamma.reshape(C, 1).astype(jnp.float32)
        b2 = beta.reshape(C, 1).astype(jnp.float32)
        out3 = pl.pallas_call(
            functools.partial(_fused_kernel, count=float(N * HW)),
            out_shape=jax.ShapeDtypeStruct((N, C, HW), x.dtype),
            compiler_params=pltpu.CompilerParams(vmem_limit_bytes=cap // 2),
        )(x3, g2, b2)
        return out3.reshape(N, C, H, W)

    # ---- two-pass streaming path ----------------------------------------------------
    r = _sublane_fold(C, HW)              # fold HW into sublanes when C is small
    Cr, HWr = C * r, HW // r
    x3 = x.reshape(N, Cr, HWr)            # free reshape, no HBM transpose

    hw_tile = _pick_hw_tile(HWr, Cr, max_block_bytes)
    n_tiles = (HWr + hw_tile - 1) // hw_tile
    mask_tail = (HWr % hw_tile) != 0

    block_bytes = _round_up(Cr, 8) * _round_up(hw_tile, 128) * 4
    vmem_limit = int(min(max(24 << 20, 4 * block_bytes + (2 << 20)), cap))

    x_spec = pl.BlockSpec((pl.Squeezed(), Cr, hw_tile), lambda n, t: (n, 0, t))
    cvec_in_spec = pl.BlockSpec((Cr, 1), lambda n, t: (0, 0))                       # fetched once
    cvec_out_spec = pl.BlockSpec((pl.Squeezed(), Cr, 1), lambda n, t: (n, 0, 0))    # per-N partials

    # pass 1: per-(n, row) stats; N axis megacore-parallel (v7x), tile axis reduces.
    s_nr, sq_nr = pl.pallas_call(
        functools.partial(_stats_kernel, hw_total=HWr, hw_tile=hw_tile, mask_tail=mask_tail),
        out_shape=(jax.ShapeDtypeStruct((N, Cr, 1), jnp.float32),
                   jax.ShapeDtypeStruct((N, Cr, 1), jnp.float32)),
        grid=(N, n_tiles),
        in_specs=[x_spec],
        out_specs=(cvec_out_spec, cvec_out_spec),
        compiler_params=pltpu.CompilerParams(
            dimension_semantics=("parallel", "arbitrary"),
            vmem_limit_bytes=vmem_limit),
    )(x3)

    # tiny C-sized fold of BN + NAM weighting into per-row scale/bias
    cnt = jnp.float32(N * HW)
    s = jnp.sum(s_nr.reshape(N, C, r), axis=(0, 2)).reshape(C, 1)
    sq = jnp.sum(sq_nr.reshape(N, C, r), axis=(0, 2)).reshape(C, 1)
    mean = s / cnt
    # TODO(synk): E[x^2]-E[x]^2 in f32 can cancel for activations with mean >> std; switch to a
    # mean-shifted second accumulation pass if tighter accuracy is ever required.
    var = jnp.maximum(sq / cnt - mean * mean, 0.0)
    inv_std = jax.lax.rsqrt(var + _BN_EPS)
    g = gamma.reshape(C, 1).astype(jnp.float32)
    b = beta.reshape(C, 1).astype(jnp.float32)
    w = jnp.abs(g) / jnp.sum(jnp.abs(g))
    scale = jnp.repeat(w * g * inv_std, r, axis=0)                    # (Cr, 1)
    bias = jnp.repeat(w * (b - mean * g * inv_std), r, axis=0)        # (Cr, 1)

    # pass 2: normalize + gate + residual multiply (lane-dense blocks, megacore parallel)
    out3 = pl.pallas_call(
        _apply_kernel,
        out_shape=jax.ShapeDtypeStruct((N, Cr, HWr), x.dtype),
        grid=(N, n_tiles),
        in_specs=[x_spec, cvec_in_spec, cvec_in_spec],
        out_specs=x_spec,
        compiler_params=pltpu.CompilerParams(
            dimension_semantics=("parallel", "parallel"),
            vmem_limit_bytes=vmem_limit),
    )(x3, scale, bias)

    return out3.reshape(N, C, H, W)


def _reference(x, gamma, beta):
    # Pure-JAX reference mirroring the PyTorch forward (training-mode BN).
    mean = jnp.mean(x, axis=(0, 2, 3), keepdims=True)
    var = jnp.var(x, axis=(0, 2, 3), keepdims=True)
    xn = (x - mean) / jnp.sqrt(var + _BN_EPS)
    y = xn * gamma[None, :, None, None] + beta[None, :, None, None]
    w = jnp.abs(gamma) / jnp.sum(jnp.abs(gamma))
    y = y * w[None, :, None, None]
    return jax.nn.sigmoid(y) * x


if __name__ == "__main__":
    key = jax.random.PRNGKey(0)
    kx, kg, kb = jax.random.split(key, 3)

    N, C, H, W = 2, 4, 16, 16
    x = jax.random.normal(kx, (N, C, H, W), dtype=jnp.float32)
    # Deterministic synthetic BN affine params (shapes from nn.BatchNorm2d(channels)).
    gamma = jax.random.normal(kg, (C,), dtype=jnp.float32)
    beta = 0.1 * jax.random.normal(kb, (C,), dtype=jnp.float32)
    ref = _reference(x, gamma, beta)

    # 1) fused single-pass path (x resident in VMEM; streams HBM once)
    out_fused = jax.block_until_ready(jax.jit(channel_att)(x, gamma, beta))
    assert out_fused.shape == (N, C, H, W)
    assert jnp.allclose(out_fused, ref, atol=1e-5, rtol=1e-5), "fused path mismatch"

    # 2) two-pass streaming path (forced); exercises sublane folding (C=4 -> 8 rows)
    two_pass = jax.jit(functools.partial(channel_att, single_pass_max_bytes=0))
    out_tp = jax.block_until_ready(two_pass(x, gamma, beta))
    assert jnp.allclose(out_tp, ref, atol=1e-5, rtol=1e-5), "two-pass path mismatch"

    # 3) two-pass with a lane tail (HW=23*23=529, forced 128-lane tiles) -> masked stats path
    H2 = W2 = 23
    x2 = jax.random.normal(kx, (N, C, H2, W2), dtype=jnp.float32)
    ref2 = _reference(x2, gamma, beta)
    tail_path = jax.jit(functools.partial(channel_att, single_pass_max_bytes=0,
                                          max_block_bytes=2048))
    out_tail = jax.block_until_ready(tail_path(x2, gamma, beta))
    assert out_tail.shape == (N, C, H2, W2)
    assert jnp.allclose(out_tail, ref2, atol=1e-5, rtol=1e-5), "masked-tail path mismatch"

    print("KERNEL_OK")
</pallas_src>

<mosaic_0001>
module attributes {stable_mosaic.version = 11 : i64} {
  func.func @_fused_kernel(%arg0: memref<2x4x256xf32, #tpu.memory_space<vmem>>, %arg1: memref<4x1xf32, #tpu.memory_space<vmem>>, %arg2: memref<4x1xf32, #tpu.memory_space<vmem>>, %arg3: memref<2x4x256xf32, #tpu.memory_space<vmem>>) attributes {dimension_semantics = [], scalar_prefetch = 0 : i64, scratch_operands = 0 : i64, tpu.core_type = #tpu.core_type<tc>} {
    %c0 = arith.constant 0 : index
    %c0_0 = arith.constant 0 : index
    %c0_1 = arith.constant 0 : index
    %0 = vector.load %arg0[%c0, %c0_0, %c0_1] : memref<2x4x256xf32, #tpu.memory_space<vmem>>, vector<2x4x256xf32>
    %cst = arith.constant dense<0.000000e+00> : vector<4x256xf32>
    %1 = vector.multi_reduction <add>, %0, %cst [0] : vector<2x4x256xf32> to vector<4x256xf32>
    %cst_2 = arith.constant dense<0.000000e+00> : vector<4xf32>
    %2 = vector.multi_reduction <add>, %1, %cst_2 [1] : vector<4x256xf32> to vector<4xf32>
    %3 = vector.shape_cast %2 : vector<4xf32> to vector<4x1xf32>
    %4 = arith.mulf %0, %0 : vector<2x4x256xf32>
    %cst_3 = arith.constant dense<0.000000e+00> : vector<4x256xf32>
    %5 = vector.multi_reduction <add>, %4, %cst_3 [0] : vector<2x4x256xf32> to vector<4x256xf32>
    %cst_4 = arith.constant dense<0.000000e+00> : vector<4xf32>
    %6 = vector.multi_reduction <add>, %5, %cst_4 [1] : vector<4x256xf32> to vector<4xf32>
    %7 = vector.shape_cast %6 : vector<4xf32> to vector<4x1xf32>
    %cst_5 = arith.constant 5.120000e+02 : f32
    %8 = vector.broadcast %cst_5 : f32 to vector<4x1xf32>
    %9 = arith.divf %3, %8 : vector<4x1xf32>
    %cst_6 = arith.constant 5.120000e+02 : f32
    %10 = vector.broadcast %cst_6 : f32 to vector<4x1xf32>
    %11 = arith.divf %7, %10 : vector<4x1xf32>
    %12 = arith.mulf %9, %9 : vector<4x1xf32>
    %13 = arith.subf %11, %12 : vector<4x1xf32>
    %cst_7 = arith.constant 0.000000e+00 : f32
    %14 = vector.broadcast %cst_7 : f32 to vector<4x1xf32>
    %15 = arith.maximumf %13, %14 : vector<4x1xf32>
    %cst_8 = arith.constant 9.99999974E-6 : f32
    %16 = vector.broadcast %cst_8 : f32 to vector<4x1xf32>
    %17 = arith.addf %15, %16 : vector<4x1xf32>
    %18 = math.rsqrt %17 : vector<4x1xf32>
    %c0_9 = arith.constant 0 : index
    %c0_10 = arith.constant 0 : index
    %19 = vector.load %arg1[%c0_9, %c0_10] : memref<4x1xf32, #tpu.memory_space<vmem>>, vector<4x1xf32>
    %c0_11 = arith.constant 0 : index
    %c0_12 = arith.constant 0 : index
    %20 = vector.load %arg2[%c0_11, %c0_12] : memref<4x1xf32, #tpu.memory_space<vmem>>, vector<4x1xf32>
    %21 = math.absf %19 : vector<4x1xf32>
    %22 = math.absf %19 : vector<4x1xf32>
    %23 = vector.shape_cast %22 : vector<4x1xf32> to vector<1x4x1xf32>
    %cst_13 = arith.constant dense<0.000000e+00> : vector<1xf32>
    %24 = vector.multi_reduction <add>, %23, %cst_13 [1, 2] : vector<1x4x1xf32> to vector<1xf32>
    %25 = vector.shape_cast %24 : vector<1xf32> to vector<1x1x1xf32>
    %26 = vector.extract %25[0, 0, 0] : f32 from vector<1x1x1xf32>
    %27 = vector.broadcast %26 : f32 to vector<1x1xf32>
    %28 = vector.broadcast %27 : vector<1x1xf32> to vector<4x1xf32>
    %29 = arith.divf %21, %28 : vector<4x1xf32>
    %30 = arith.mulf %29, %19 : vector<4x1xf32>
    %31 = arith.mulf %30, %18 : vector<4x1xf32>
    %32 = vector.shape_cast %31 : vector<4x1xf32> to vector<1x4x1xf32>
    %33 = arith.mulf %9, %19 : vector<4x1xf32>
    %34 = arith.mulf %33, %18 : vector<4x1xf32>
    %35 = arith.subf %20, %34 : vector<4x1xf32>
    %36 = arith.mulf %29, %35 : vector<4x1xf32>
    %37 = vector.shape_cast %36 : vector<4x1xf32> to vector<1x4x1xf32>
    %38 = vector.broadcast %32 : vector<1x4x1xf32> to vector<2x4x256xf32>
    %39 = arith.mulf %0, %38 : vector<2x4x256xf32>
    %40 = vector.broadcast %37 : vector<1x4x1xf32> to vector<2x4x256xf32>
    %41 = arith.addf %39, %40 : vector<2x4x256xf32>
    %42 = arith.negf %41 : vector<2x4x256xf32>
    %43 = math.exp %42 : vector<2x4x256xf32>
    %cst_14 = arith.constant 1.000000e+00 : f32
    %44 = vector.broadcast %cst_14 : f32 to vector<2x4x256xf32>
    %45 = arith.addf %44, %43 : vector<2x4x256xf32>
    %46 = arith.divf %44, %45 : vector<2x4x256xf32>
    %47 = arith.mulf %46, %0 : vector<2x4x256xf32>
    %c0_15 = arith.constant 0 : index
    %c0_16 = arith.constant 0 : index
    %c0_17 = arith.constant 0 : index
    %48 = vector.load %arg3[%c0_15, %c0_16, %c0_17] : memref<2x4x256xf32, #tpu.memory_space<vmem>>, vector<2x4x256xf32>
    tpu.vector_store %arg3[%c0_15, %c0_16, %c0_17], %47 {strides = array<i32>} : memref<2x4x256xf32, #tpu.memory_space<vmem>>, vector<2x4x256xf32>,
    return
  }
}

</mosaic_0001>

<llo_original>
// kernel: channel_att.1
$region0: #{channel_att.1}
  #allocation0 [shape = 'u32[]', space=smem, size = 0x4, offset = 0x4, fixed_abs, tag = 'smem constant byte address 0x4 - core index']
  #allocation1 [shape = 'u32[144,128]{1,0:T(1,128)}', space=vmem, size = 0x12000, scoped, tag = 'internal scratch']
  %s0 = inlined_call_operand.vmem [shape: f32[2,4,256], index: 0, kind: input, shape index: {}]
  %s1 = inlined_call_operand.vmem [shape: f32[4,1], index: 1, kind: input, shape index: {}]
  %s2 = inlined_call_operand.vmem [shape: f32[4,1], index: 2, kind: input, shape index: {}]
  %s3 = inlined_call_operand.vmem [shape: f32[2,4,256], index: 3, kind: output, shape index: {}]
  %s4 = sld [smem:[#allocation0]]
  $region22: #{channel_att.1} parent=0
    _
  %s6 = ssub.s32 1, %s4
  %s7 = scalar_select 0, %s6, %s4
  // Predicated region
  $region2: #{channel_att.1} parent=0 // pred_check
    _
  $region3: #{channel_att.1} parent=0 // pred_check_branch
    %9 = sbr.rel (0) target = $region5
  $region4: #{channel_att.1} parent=0 // pred_region
    _
  $region5: #{channel_att.1} parent=0 // pred_fallthru
    _
  // Predicated region
  $region6: #{channel_att.1} parent=0 // pred_check
    _
  $region7: #{channel_att.1} parent=0 // pred_check_branch
    %11 = sbr.rel (0) target = $region9
  $region8: #{channel_att.1} parent=0 // pred_region
    _
  $region9: #{channel_att.1} parent=0 // pred_fallthru
    _
  // Predicated region
  $region10: #{channel_att.1} parent=0 // pred_check
    _
  $region11: #{channel_att.1} parent=0 // pred_check_branch
    %13 = sbr.rel (0) target = $region13
  $region12: #{channel_att.1} parent=0 // pred_region
    _
  $region13: #{channel_att.1} parent=0 // pred_fallthru
    _
  %v14 = vld [vmem:[%s0] sm:$0xff]
  %v15 = vld [vmem:[%s0 + $0x8] sm:$0xff]
  %v18 = vcombine.high %v14, %v14
  %v19 = vcombine.high %v15, %v15
  %vm22 = vcmask 1043456
  %v23 = vsel %vm22, %v14, 0.0
  %v24 = vsel %vm22, %v15, 0.0
  %v25 = vadd.f32 %v23, %v24
  %v26 = vsel %vm22, %v18, 0.0
  %v27 = vsel %vm22, %v19, 0.0
  %v28 = vadd.f32 %v26, %v27
  %v29 = vsel %vm22, %v25, 0.0
  %v30 = vsel %vm22, %v28, 0.0
  %v31 = vadd.f32 %v29, %v30
  %32 = vadd.xlane.f32.xlu0 %v31
  %v33 = vpop.xlane.xlu0 %32
  %v34 = vmul.f32 %v14, %v14
  %v35 = vmul.f32 %v15, %v15
  %v38 = vcombine.high %v34, %v34
  %v39 = vcombine.high %v35, %v35
  %v42 = vsel %vm22, %v34, 0.0
  %v43 = vsel %vm22, %v35, 0.0
  %v44 = vadd.f32 %v42, %v43
  %v45 = vsel %vm22, %v38, 0.0
  %v46 = vsel %vm22, %v39, 0.0
  %v47 = vadd.f32 %v45, %v46
  %v48 = vsel %vm22, %v44, 0.0
  %v49 = vsel %vm22, %v47, 0.0
  %v50 = vadd.f32 %v48, %v49
  %51 = vadd.xlane.f32.xlu0 %v50
  %v52 = vpop.xlane.xlu0 %51
  %v53 = vrcp.pop 512.0
  %v54 = vmul.f32 %v33, %v53
  %v55 = vmul.f32 %v52, %v53
  %v56 = vmul.f32 %v54, %v54
  %v57 = vsub.f32 %v55, %v56
  %v58 = vmax.f32 %v57, 0.0
  %v59 = vadd.f32 %v58, 1e-05
  %v60 = vrsqrt.pop %v59
  %v61 = vld [vmem:[%s1] sm:$0xf]
  %v62 = vld [vmem:[%s2] sm:$0xf]
  %v63 = vand.u32 2147483647, %v61
  %vm64 = vcmask 3072
  %v65 = vsel %vm64, %v63, 0.0
  %66 = vadd.xlane.f32.xlu0 %v65
  %v67 = vpop.xlane.xlu0 %66
  %v68 = vrot.slane %v67, 4
  %v69 = vadd.f32 %v67, %v68
  %v70 = vrot.slane %v69, 2
  %v71 = vadd.f32 %v69, %v70
  %v72 = vrot.slane %v71, 1
  %v73 = vadd.f32 %v71, %v72
  %s74 = vtos %v73
  %v75 = vstv %s74
  %v76 = vrcp.pop %v75
  %v77 = vmul.f32 %v63, %v76
  %v78 = vmul.f32 %v77, %v61
  %v79 = vmul.f32 %v78, %v60
  %v80 = vmul.f32 %v54, %v61
  %v81 = vmul.f32 %v80, %v60
  %v82 = vsub.f32 %v62, %v81
  %v83 = vmul.f32 %v77, %v82
  %85 = vset.pattern.permute.xlu0 0
  %86 = vperm.xlu0 %85, %v79
  %v87 = vpop.permute.xlu0 %86
  %v89 = vunpack.c.l.s4 839922192
  %v90 = vunpack.c.0.s8 %v89
  %v91 = vlaneseq
  %v92 = vshrl.u32 %v91, 7
  %v93 = vsub.s32 %v90, %v92
  %v94 = vrot.slane %v87, %v93
  %v96 = vmul.f32 %v14, %v94
  %v97 = vmul.f32 %v15, %v94
  %99 = vset.pattern.permute.xlu0 0
  %100 = vperm.xlu0 %99, %v83
  %v101 = vpop.permute.xlu0 %100
  %v103 = vunpack.c.l.s4 839922192
  %v104 = vunpack.c.0.s8 %v103
  %v105 = vlaneseq
  %v106 = vshrl.u32 %v105, 7
  %v107 = vsub.s32 %v104, %v106
  %v108 = vrot.slane %v101, %v107
  %v110 = vadd.f32 %v96, %v108
  %v111 = vadd.f32 %v97, %v108
  %v112 = vxor.u32 %v110, 2147483648
  %v113 = vxor.u32 %v111, 2147483648
  %v114 = vmul.f32 %v112, 1.442695
  %v115 = vpow.pop %v114
  %v116 = vmul.f32 %v113, 1.442695
  %v117 = vpow.pop %v116
  %v118 = vadd.f32 %v115, 1.0
  %v119 = vadd.f32 %v117, 1.0
  %v120 = vrcp.pop %v118
  %v121 = vmul.f32 1.0, %v120
  %v122 = vrcp.pop %v119
  %v123 = vmul.f32 1.0, %v122
  %v124 = vmul.f32 %v121, %v14
  %v125 = vmul.f32 %v123, %v15
  %126 = vst [vmem:[%s3] sm:$0xff] %v124
  %127 = vst [vmem:[%s3 + $0x8] sm:$0xff] %v125
  // Predicated region
  $region14: #{channel_att.1} parent=0 // pred_check
    _
  $region15: #{channel_att.1} parent=0 // pred_check_branch
    %129 = sbr.rel (0) target = $region17
  $region16: #{channel_att.1} parent=0 // pred_region
    _
  $region17: #{channel_att.1} parent=0 // pred_fallthru
    _
  // Predicated region
  $region18: #{channel_att.1} parent=0 // pred_check
    _
  $region19: #{channel_att.1} parent=0 // pred_check_branch
    %131 = sbr.rel (0) target = $region21
  $region20: #{channel_att.1} parent=0 // pred_region
    _
  $region21: #{channel_att.1} parent=0 // pred_fallthru
    _

</llo_original>
